<compile_context>
chip_gen: v7x
topology: tpu7x:2x2x1
jax: 0.10.0
libtpu: 0.0.40
codegen_flags: <defaults>
</compile_context>

<pallas_src>
import jax
import jax.numpy as jnp
from jax.experimental import pallas as pl
from jax.experimental.pallas import tpu as pltpu


# ---------------------------------------------------------------------------
# Pallas kernels
# ---------------------------------------------------------------------------
def conv_bn_act(x, w_hwio, scale, bias, *, stride=1, relu=False, residual=None):
    """Conv (kxk, pad=(k-1)//2, given stride) + folded-BN affine + optional
    residual add + optional ReLU.

    x:        (Cin, N, H, W)  channels-major, f32
    residual: (Cout, N, Ho, Wo) or None
    returns:  (Cout, N, Ho, Wo) f32
    """
    Cin, N, H, W = x.shape
    kh, kw, _, Cout = w_hwio.shape
    pad = (kh - 1) // 2
    xp = jnp.pad(x, ((0, 0), (0, 0), (pad, pad), (pad, pad))) if pad else x
    Ho = (H + 2 * pad - kh) // stride + 1
    Wo = (W + 2 * pad - kw) // stride + 1
    T = kh * kw
    M = N * Ho * Wo                      # spatial*batch -> lane axis (lane dense)
    K = T * Cin                          # single packed contraction

    # Glue (pure data movement): build the packed tap matrix (K, M) in bf16.
    taps = []
    for dh in range(kh):
        for dw in range(kw):
            taps.append(xp[:, :,
                           dh:dh + stride * (Ho - 1) + 1:stride,
                           dw:dw + stride * (Wo - 1) + 1:stride])
    taps2d = jnp.stack(taps, axis=0).reshape(K, M).astype(jnp.bfloat16)
    # weights as (Cout, T*Cin) matching the tap ordering
    w2d = jnp.transpose(w_hwio.reshape(T, Cin, Cout), (2, 0, 1)) \
             .reshape(Cout, K).astype(jnp.bfloat16)
    s2 = scale.reshape(Cout, 1).astype(jnp.float32)
    b2 = bias.reshape(Cout, 1).astype(jnp.float32)
    has_res = residual is not None

    def kernel(t_ref, w_ref, s_ref, b_ref, *rest):
        if has_res:
            res_ref, o_ref = rest
        else:
            (o_ref,) = rest
        # One MXU matmul: (Cout, K) @ (K, M) with f32 accumulation.
        acc = jnp.dot(w_ref[...], t_ref[...],
                      preferred_element_type=jnp.float32)
        y = acc * s_ref[...] + b_ref[...]          # folded BatchNorm (eval mode)
        if has_res:
            y = y + res_ref[...]
        if relu:
            y = jnp.maximum(y, 0.0)
        o_ref[...] = y

    in_specs = [
        pl.BlockSpec((K, M), lambda i: (0, 0)),
        pl.BlockSpec((Cout, K), lambda i: (0, 0)),
        pl.BlockSpec((Cout, 1), lambda i: (0, 0)),
        pl.BlockSpec((Cout, 1), lambda i: (0, 0)),
    ]
    args = [taps2d, w2d, s2, b2]
    if has_res:
        in_specs.append(pl.BlockSpec((Cout, M), lambda i: (0, 0)))
        args.append(residual.reshape(Cout, M).astype(jnp.float32))

    out = pl.pallas_call(
        kernel,
        out_shape=jax.ShapeDtypeStruct((Cout, M), jnp.float32),
        grid=(1,),
        in_specs=in_specs,
        out_specs=pl.BlockSpec((Cout, M), lambda i: (0, 0)),
        compiler_params=pltpu.CompilerParams(dimension_semantics=("arbitrary",)),
    )(*args)
    return out.reshape(Cout, N, Ho, Wo)


def fuse_up_add_relu(x1, w1x1_hwio, scale, bias, x0):
    """y0 = relu(x0 + upsample2_nearest(bn(conv1x1(x1)))), fused in one kernel.

    x1: (C1, N, H1, W1) f32 (low-res branch), x0: (C0, N, 2*H1, 2*W1) f32.
    Nearest upsample is expressed as a broadcast over a leading (dy,dx) axis of
    the pre-rearranged x0 block, so the whole fuse path stays in VMEM.
    Returns y0 in NCHW: (N, C0, 2*H1, 2*W1).
    """
    C1, N, H1, W1 = x1.shape
    C0 = w1x1_hwio.shape[-1]
    M1 = N * H1 * W1

    x1b = x1.reshape(C1, M1).astype(jnp.bfloat16)
    wT = jnp.transpose(w1x1_hwio.reshape(C1, C0)).astype(jnp.bfloat16)   # (C0, C1)
    s2 = scale.reshape(C0, 1).astype(jnp.float32)
    b2 = bias.reshape(C0, 1).astype(jnp.float32)
    # x0 rearranged so axis 0 indexes the (dy, dx) position inside each 2x2
    # upsample block: x0_r[dy*2+dx, c, n*H1*W1 + h1*W1 + w1] = x0[c,n,2h1+dy,2w1+dx]
    x0_r = (x0.reshape(C0, N, H1, 2, W1, 2)
              .transpose(3, 5, 0, 1, 2, 4)
              .reshape(4, C0, M1).astype(jnp.float32))

    def kernel(x1_ref, w_ref, s_ref, b_ref, x0_ref, o_ref):
        up = jnp.dot(w_ref[...], x1_ref[...],
                     preferred_element_type=jnp.float32)        # (C0, M1)
        up = up * s_ref[...] + b_ref[...]
        # nearest-upsample == broadcast over the leading (dy,dx) axis
        o_ref[...] = jnp.maximum(x0_ref[...] + up[None, :, :], 0.0)

    out = pl.pallas_call(
        kernel,
        out_shape=jax.ShapeDtypeStruct((4, C0, M1), jnp.float32),
        grid=(1,),
        in_specs=[
            pl.BlockSpec((C1, M1), lambda i: (0, 0)),
            pl.BlockSpec((C0, C1), lambda i: (0, 0)),
            pl.BlockSpec((C0, 1), lambda i: (0, 0)),
            pl.BlockSpec((C0, 1), lambda i: (0, 0)),
            pl.BlockSpec((4, C0, M1), lambda i: (0, 0, 0)),
        ],
        out_specs=pl.BlockSpec((4, C0, M1), lambda i: (0, 0, 0)),
        compiler_params=pltpu.CompilerParams(dimension_semantics=("arbitrary",)),
    )(x1b, wT, s2, b2, x0_r)

    # back to NCHW
    y0 = (out.reshape(2, 2, C0, N, H1, W1)
             .transpose(3, 2, 4, 0, 5, 1)
             .reshape(N, C0, 2 * H1, 2 * W1))
    return y0


# ---------------------------------------------------------------------------
# Parameters (deterministic, synthetic).  BasicBlock (expansion = 1).
# Config: num_branches=2, num_blocks=(2,2), num_inchannels=num_channels=(4,8),
#         fuse_method='SUM', multi_scale_output=True.
# ---------------------------------------------------------------------------
def _init_conv(key, kh, kw, cin, cout):
    fan = kh * kw * cin
    return jax.random.normal(key, (kh, kw, cin, cout), jnp.float32) / jnp.sqrt(fan)


def _init_bn_folded(key, c):
    k1, k2, k3, k4 = jax.random.split(key, 4)
    gamma = 1.0 + 0.1 * jax.random.normal(k1, (c,), jnp.float32)
    beta = 0.1 * jax.random.normal(k2, (c,), jnp.float32)
    mean = 0.1 * jax.random.normal(k3, (c,), jnp.float32)
    var = jax.random.uniform(k4, (c,), jnp.float32, 0.5, 1.5)
    scale = gamma / jnp.sqrt(var + 1e-5)
    bias = beta - mean * scale
    return scale, bias


def make_params(key, channels=(4, 8), num_blocks=(2, 2)):
    params = {"branches": [], "fuse": {}}
    for i, c in enumerate(channels):
        blocks = []
        for _ in range(num_blocks[i]):
            key, k1, k2, k3, k4 = jax.random.split(key, 5)
            s1, b1 = _init_bn_folded(k2, c)
            s2, b2 = _init_bn_folded(k4, c)
            blocks.append({
                "w1": _init_conv(k1, 3, 3, c, c), "s1": s1, "b1": b1,
                "w2": _init_conv(k3, 3, 3, c, c), "s2": s2, "b2": b2,
            })
        params["branches"].append(blocks)
    # fuse_layers[0][1]: Conv1x1(c1->c0) + BN(c0) + Upsample(2, nearest)
    key, ku, kub = jax.random.split(key, 3)
    us, ub = _init_bn_folded(kub, channels[0])
    params["fuse"]["up_w"] = _init_conv(ku, 1, 1, channels[1], channels[0])
    params["fuse"]["up_s"], params["fuse"]["up_b"] = us, ub
    # fuse_layers[1][0]: Conv3x3 stride2 (c0->c1) + BN(c1)
    key, kd, kdb = jax.random.split(key, 3)
    ds, db = _init_bn_folded(kdb, channels[1])
    params["fuse"]["down_w"] = _init_conv(kd, 3, 3, channels[0], channels[1])
    params["fuse"]["down_s"], params["fuse"]["down_b"] = ds, db
    return params


# ---------------------------------------------------------------------------
# Forward pass (Pallas version)
# ---------------------------------------------------------------------------
def basic_block(x, p):
    h = conv_bn_act(x, p["w1"], p["s1"], p["b1"], stride=1, relu=True)
    return conv_bn_act(h, p["w2"], p["s2"], p["b2"], stride=1, relu=True,
                       residual=x)


def hr_module_forward(x_list_nchw, params):
    # NCHW -> channels-major (C, N, H, W); pure data movement (XLA glue)
    xs = [jnp.transpose(x, (1, 0, 2, 3)).astype(jnp.float32) for x in x_list_nchw]
    # branches
    for i in range(2):
        h = xs[i]
        for blk in params["branches"][i]:
            h = basic_block(h, blk)
        xs[i] = h
    f = params["fuse"]
    # i = 0 : y = relu(x0 + upsample(bn(conv1x1(x1))))  -- single fused kernel
    y0 = fuse_up_add_relu(xs[1], f["up_w"], f["up_s"], f["up_b"], xs[0])
    # i = 1 : y = relu(bn(conv3x3_s2(x0)) + x1)  -- residual epilogue of the conv
    d = conv_bn_act(xs[0], f["down_w"], f["down_s"], f["down_b"], stride=2,
                    relu=True, residual=xs[1])
    y1 = jnp.transpose(d, (1, 0, 2, 3))        # (C1,N,H1,W1) -> NCHW
    return [y0, y1]


# ---------------------------------------------------------------------------
# Pure-JAX reference (for correctness check).  compute_dtype=bfloat16 models
# the kernel's mixed precision (bf16 operands, f32 accumulation) exactly;
# compute_dtype=float32 is the full-precision module semantics.
# ---------------------------------------------------------------------------
def _ref_cba(x, w, s, b, *, stride, relu, residual=None, cdt=jnp.float32):
    pad = (w.shape[0] - 1) // 2
    y = jax.lax.conv_general_dilated(
        x.astype(cdt), w.astype(cdt), (stride, stride), ((pad, pad), (pad, pad)),
        dimension_numbers=("NHWC", "HWIO", "NHWC"),
        preferred_element_type=jnp.float32)
    y = y * s + b
    if residual is not None:
        y = y + residual
    return jnp.maximum(y, 0.0) if relu else y


def hr_module_forward_ref(x_list_nchw, params, compute_dtype=jnp.float32):
    xs = [jnp.transpose(x, (0, 2, 3, 1)).astype(jnp.float32) for x in x_list_nchw]
    for i in range(2):
        h = xs[i]
        for p in params["branches"][i]:
            t = _ref_cba(h, p["w1"], p["s1"], p["b1"], stride=1, relu=True,
                         cdt=compute_dtype)
            h = _ref_cba(t, p["w2"], p["s2"], p["b2"], stride=1, relu=True,
                         residual=h, cdt=compute_dtype)
        xs[i] = h
    f = params["fuse"]
    up = _ref_cba(xs[1], f["up_w"], f["up_s"], f["up_b"], stride=1, relu=False,
                  cdt=compute_dtype)
    up = jnp.repeat(jnp.repeat(up, 2, axis=1), 2, axis=2)
    y0 = jnp.maximum(xs[0] + up, 0.0)
    down = _ref_cba(xs[0], f["down_w"], f["down_s"], f["down_b"], stride=2,
                    relu=False, cdt=compute_dtype)
    y1 = jnp.maximum(down + xs[1], 0.0)
    return [jnp.transpose(y, (0, 3, 1, 2)) for y in (y0, y1)]


# ---------------------------------------------------------------------------
if __name__ == "__main__":
    key = jax.random.PRNGKey(0)
    kp, k0, k1 = jax.random.split(key, 3)

    channels = (4, 8)
    params = make_params(kp, channels=channels, num_blocks=(2, 2))

    # x[0]: high-res branch (N, C0, 16, 16); x[1]: low-res branch (N, C1, 8, 8)
    x0 = jax.random.normal(k0, (2, channels[0], 16, 16), jnp.float32)
    x1 = jax.random.normal(k1, (2, channels[1], 8, 8), jnp.float32)

    outs = hr_module_forward([x0, x1], params)
    outs = [jax.block_until_ready(o) for o in outs]

    # Tight check vs a reference using the same numerics (bf16 operands,
    # f32 accumulation): differences are summation-order only.
    refs_bf16 = hr_module_forward_ref([x0, x1], params, compute_dtype=jnp.bfloat16)
    for o, r in zip(outs, refs_bf16):
        assert o.shape == r.shape
        assert jnp.allclose(o, r, atol=5e-3, rtol=5e-3), \
            "mismatch vs bf16-matched reference"

    # Loose check vs the full-f32 module semantics (bf16 operand rounding only).
    refs_f32 = hr_module_forward_ref([x0, x1], params, compute_dtype=jnp.float32)
    for o, r in zip(outs, refs_f32):
        assert jnp.allclose(o, r, atol=1e-1, rtol=1e-1), \
            "drift vs f32 reference too large"

    print("KERNEL_OK")
</pallas_src>

<mosaic_0001>
module attributes {stable_mosaic.version = 11 : i64} {
  func.func @kernel(%arg0: i32, %arg1: memref<36x512xbf16, #tpu.memory_space<vmem>>, %arg2: memref<4x36xbf16, #tpu.memory_space<vmem>>, %arg3: memref<4x1xf32, #tpu.memory_space<vmem>>, %arg4: memref<4x1xf32, #tpu.memory_space<vmem>>, %arg5: memref<4x512xf32, #tpu.memory_space<vmem>>) attributes {dimension_semantics = [#tpu.dimension_semantics<arbitrary>], iteration_bounds = array<i64: 1>, scalar_prefetch = 0 : i64, scratch_operands = 0 : i64, tpu.core_type = #tpu.core_type<tc>, window_params = [{pipeline_mode = #tpu.pipeline_mode<synchronous>, transform_indices = @transform_0, window_bounds = array<i64: 36, 512>}, {pipeline_mode = #tpu.pipeline_mode<synchronous>, transform_indices = @transform_1, window_bounds = array<i64: 4, 36>}, {pipeline_mode = #tpu.pipeline_mode<synchronous>, transform_indices = @transform_2, window_bounds = array<i64: 4, 1>}, {pipeline_mode = #tpu.pipeline_mode<synchronous>, transform_indices = @transform_3, window_bounds = array<i64: 4, 1>}, {pipeline_mode = #tpu.pipeline_mode<synchronous>, transform_indices = @transform_4, window_bounds = array<i64: 4, 512>}]} {
    %c0 = arith.constant 0 : index
    %c0_0 = arith.constant 0 : index
    %0 = vector.load %arg2[%c0, %c0_0] : memref<4x36xbf16, #tpu.memory_space<vmem>>, vector<4x36xbf16>
    %c0_1 = arith.constant 0 : index
    %c0_2 = arith.constant 0 : index
    %1 = vector.load %arg1[%c0_1, %c0_2] : memref<36x512xbf16, #tpu.memory_space<vmem>>, vector<36x512xbf16>
    %cst = arith.constant dense<0.000000e+00> : vector<4x512xf32>
    %2 = tpu.matmul %0, %1, %cst {dimension_numbers = #tpu.dot_dimension_numbers<[1], [0], [0], [1], [0, 0, 1, 1], [], []>} : vector<4x36xbf16>, vector<36x512xbf16>, vector<4x512xf32> -> vector<4x512xf32>
    %c0_3 = arith.constant 0 : index
    %c0_4 = arith.constant 0 : index
    %3 = vector.load %arg3[%c0_3, %c0_4] : memref<4x1xf32, #tpu.memory_space<vmem>>, vector<4x1xf32>
    %4 = vector.broadcast %3 : vector<4x1xf32> to vector<4x512xf32>
    %5 = arith.mulf %2, %4 : vector<4x512xf32>
    %c0_5 = arith.constant 0 : index
    %c0_6 = arith.constant 0 : index
    %6 = vector.load %arg4[%c0_5, %c0_6] : memref<4x1xf32, #tpu.memory_space<vmem>>, vector<4x1xf32>
    %7 = vector.broadcast %6 : vector<4x1xf32> to vector<4x512xf32>
    %8 = arith.addf %5, %7 : vector<4x512xf32>
    %cst_7 = arith.constant 0.000000e+00 : f32
    %9 = vector.broadcast %cst_7 : f32 to vector<4x512xf32>
    %10 = arith.maximumf %8, %9 : vector<4x512xf32>
    %c0_8 = arith.constant 0 : index
    %c0_9 = arith.constant 0 : index
    %11 = vector.load %arg5[%c0_8, %c0_9] : memref<4x512xf32, #tpu.memory_space<vmem>>, vector<4x512xf32>
    tpu.vector_store %arg5[%c0_8, %c0_9], %10 {strides = array<i32>} : memref<4x512xf32, #tpu.memory_space<vmem>>, vector<4x512xf32>,
    return
  }
  func.func @transform_0(%arg0: i32) -> (i32, i32) {
    %c0_i32 = arith.constant 0 : i32
    %c0_i32_0 = arith.constant 0 : i32
    %c0_i32_1 = arith.constant 0 : i32
    return %c0_i32, %c0_i32_0 : i32, i32
  }
  func.func @transform_1(%arg0: i32) -> (i32, i32) {
    %c0_i32 = arith.constant 0 : i32
    %c0_i32_0 = arith.constant 0 : i32
    %c0_i32_1 = arith.constant 0 : i32
    return %c0_i32, %c0_i32_0 : i32, i32
  }
  func.func @transform_2(%arg0: i32) -> (i32, i32) {
    %c0_i32 = arith.constant 0 : i32
    %c0_i32_0 = arith.constant 0 : i32
    %c0_i32_1 = arith.constant 0 : i32
    return %c0_i32, %c0_i32_0 : i32, i32
  }
  func.func @transform_3(%arg0: i32) -> (i32, i32) {
    %c0_i32 = arith.constant 0 : i32
    %c0_i32_0 = arith.constant 0 : i32
    %c0_i32_1 = arith.constant 0 : i32
    return %c0_i32, %c0_i32_0 : i32, i32
  }
  func.func @transform_4(%arg0: i32) -> (i32, i32) {
    %c0_i32 = arith.constant 0 : i32
    %c0_i32_0 = arith.constant 0 : i32
    %c0_i32_1 = arith.constant 0 : i32
    return %c0_i32, %c0_i32_0 : i32, i32
  }
}

</mosaic_0001>

<llo_original>
// kernel: tpu_custom_call.1
$region0: #{tpu_custom_call.1}
  #allocation0 [shape = 'u32[]', space=smem, size = 0x4, offset = 0x4, fixed_abs, tag = 'smem constant byte address 0x4 - core index']
  #allocation1 [shape = 'u32[144,128]{1,0:T(1,128)}', space=vmem, size = 0x12000, scoped, tag = 'internal scratch']
  %s0 = inlined_call_operand.hbm [shape: bf16[36,512], index: 0, kind: input, shape index: {}]
  %s1 = inlined_call_operand.vmem [shape: bf16[4,36], index: 1, kind: input, shape index: {}]
  %s2 = inlined_call_operand.vmem [shape: f32[4,1], index: 2, kind: input, shape index: {}]
  %s3 = inlined_call_operand.vmem [shape: f32[4,1], index: 3, kind: input, shape index: {}]
  %s4 = inlined_call_operand.hbm [shape: f32[4,512], index: 4, kind: output, shape index: {}]
  %s5 = sld [smem:[#allocation0]]
  $region30: #{tpu_custom_call.1} parent=0
    _
  %s7 = ssub.s32 1, %s5
  %s8 = scalar_select 0, %s7, %s5
  $region1: #{tpu_custom_call.1} parent=0
    #allocation2 [shape = 'u8[40960]{0}', space=vmem, size = 0xa000, scoped, tag = 'input window, operand 0, single buffered']
    #allocation3 [shape = 's32[1]{0}', space=sflag, size = 0x4, scoped, tag = 'scoped memory for tpu_custom_call.1']
    #allocation4 [shape = 's32[1]{0}', space=sflag, size = 0x4, scoped, tag = 'scoped memory for tpu_custom_call.1']
    #allocation5 [shape = 'u8[8192]{0}', space=vmem, size = 0x2000, scoped, tag = 'output window, operand 0, single buffered']
    %9 = vsyncpa [#allocation3], 0
    %10 = vsyncpa [#allocation4], 0
    // Predicated region
    $region2: #{tpu_custom_call.1} parent=1 // pred_check
      _
    $region3: #{tpu_custom_call.1} parent=1 // pred_check_branch
      %12 = sbr.rel (0) target = $region5
    $region4: #{tpu_custom_call.1} parent=1 // pred_region
      %s14 = ssub.s32 1280, 1280
      %15 = vsyncadd [#allocation3], %s14
      %s16 = sshll.u32 [#allocation2], 4
      %s17 = int_to_ptr.vmem [resolvable:$true] %s16
      %22 = dma.hbm_to_vmem [thread:$0]  %s0, 1280, %s17, [#allocation3], 256, 256, 16
    $region5: #{tpu_custom_call.1} parent=1 // pred_fallthru
      _
    // Predicated region
    $region6: #{tpu_custom_call.1} parent=1 // pred_check
      _
    $region7: #{tpu_custom_call.1} parent=1 // pred_check_branch
      %24 = sbr.rel (0) target = $region9
    $region8: #{tpu_custom_call.1} parent=1 // pred_region
      _
    $region9: #{tpu_custom_call.1} parent=1 // pred_fallthru
      _
    // Predicated region
    $region10: #{tpu_custom_call.1} parent=1 // pred_check
      _
    $region11: #{tpu_custom_call.1} parent=1 // pred_check_branch
      %26 = sbr.rel (0) target = $region13
    $region12: #{tpu_custom_call.1} parent=1 // pred_region
      _
    $region13: #{tpu_custom_call.1} parent=1 // pred_fallthru
      _
    // Predicated region
    $region14: #{tpu_custom_call.1} parent=1 // pred_check
      _
    $region15: #{tpu_custom_call.1} parent=1 // pred_check_branch
      %28 = sbr.rel (0) target = $region17
    $region16: #{tpu_custom_call.1} parent=1 // pred_region
      _
    $region17: #{tpu_custom_call.1} parent=1 // pred_fallthru
      _
    // Predicated region
    $region18: #{tpu_custom_call.1} parent=1 // pred_check
      _
    $region19: #{tpu_custom_call.1} parent=1 // pred_check_branch
      %30 = sbr.rel (0) target = $region21
    $region20: #{tpu_custom_call.1} parent=1 // pred_region
      %31 = dma.done [#allocation3], 1280
    $region21: #{tpu_custom_call.1} parent=1 // pred_fallthru
      _
    %v33 = vld [vmem:[%s1] sm:$0x3]
    %v34 = vld [vmem:[#allocation2] sm:$0xff]
    %v35 = vld [vmem:[#allocation2 + $0x8] sm:$0xff]
    %v36 = vld [vmem:[#allocation2 + $0x10] sm:$0xff]
    %v37 = vld [vmem:[#allocation2 + $0x18] sm:$0xff]
    %v38 = vld [vmem:[#allocation2 + $0x20] sm:$0xff]
    %v39 = vld [vmem:[#allocation2 + $0x28] sm:$0xff]
    %v40 = vld [vmem:[#allocation2 + $0x30] sm:$0xff]
    %v41 = vld [vmem:[#allocation2 + $0x38] sm:$0xff]
    %v42 = vld [vmem:[#allocation2 + $0x40] sm:$0x33]
    %v43 = vld [vmem:[#allocation2 + $0x48] sm:$0x33]
    %v54 = vunpack.c.l.b16 %v34
    %v55 = vunpack.c.h.b16 %v34
    %v56 = vunpack.c.l.b16 %v35
    %v57 = vunpack.c.h.b16 %v35
    %v58 = vunpack.c.l.b16 %v36
    %v59 = vunpack.c.h.b16 %v36
    %v60 = vunpack.c.l.b16 %v37
    %v61 = vunpack.c.h.b16 %v37
    %v62 = vunpack.c.l.b16 %v38
    %v63 = vunpack.c.h.b16 %v38
    %v64 = vunpack.c.l.b16 %v39
    %v65 = vunpack.c.h.b16 %v39
    %v66 = vunpack.c.l.b16 %v40
    %v67 = vunpack.c.h.b16 %v40
    %v68 = vunpack.c.l.b16 %v41
    %v69 = vunpack.c.h.b16 %v41
    %v70 = vunpack.c.l.b16 %v42
    %v71 = vunpack.c.h.b16 %v42
    %v72 = vunpack.c.l.b16 %v43
    %v73 = vunpack.c.h.b16 %v43
    %v74 = vpack.c.b16 %v58, %v54
    %v75 = vpack.c.b16 %v59, %v55
    %v76 = vpack.c.b16 %v60, %v56
    %v77 = vpack.c.b16 %v61, %v57
    %v78 = vpack.c.b16 %v66, %v62
    %v79 = vpack.c.b16 %v67, %v63
    %v80 = vpack.c.b16 %v68, %v64
    %v81 = vpack.c.b16 %v69, %v65
    %v82 = vpack.c.b16 %v70, %v70
    %v83 = vpack.c.b16 %v71, %v71
    %v84 = vpack.c.b16 %v72, %v72
    %v85 = vpack.c.b16 %v73, %v73
    %vm94 = vcmask 293888
    %v96 = vsel %vm94, %v33, 0
    %vm98 = vcmask 1041408
    %v100 = vsel %vm98, %v82, 0
    %v103 = vsel %vm98, %v83, 0
    %v106 = vsel %vm98, %v84, 0
    %v109 = vsel %vm98, %v85, 0
    %111 = vmatprep.subr.bf16.mxu0 %v75
    %112 = vmatpush1.bf16.msra.mxu0 %v74
    %113 = vmatprep.subr.bf16.mxu0 %v79
    %114 = vmatpush1.bf16.msra.mxu0 %v78
    %115 = vmatprep.subr.bf16.mxu0 %v103
    %116 = vmatpush1.bf16.msra.mxu0 %v100
    %117 = vmatprep.subr.bf16.mxu0 0
    %118 = vmatpush1.bf16.msra.mxu0 0
    %119 = vmatprep.subr.bf16.mxu0 0
    %120 = vmatpush1.bf16.msra.mxu0 0
    %121 = vmatprep.subr.bf16.mxu0 0
    %122 = vmatpush1.bf16.msra.mxu0 0
    %123 = vmatprep.subr.bf16.mxu0 0
    %124 = vmatpush1.bf16.msra.mxu0 0
    %125 = vmatprep.subr.bf16.mxu0 0
    %126 = vmatpush1.bf16.msra.mxu0 0
    %127 = vmatprep.subr.bf16.mxu0 0
    %128 = vmatpush1.bf16.msra.mxu0 0
    %129 = vmatprep.subr.bf16.mxu0 0
    %130 = vmatpush1.bf16.msra.mxu0 0
    %131 = vmatprep.subr.bf16.mxu0 0
    %132 = vmatpush1.bf16.msra.mxu0 0
    %133 = vmatprep.subr.bf16.mxu0 0
    %134 = vmatpush1.bf16.msra.mxu0 0
    %135 = vmatprep.subr.bf16.mxu0 0
    %136 = vmatpush1.bf16.msra.mxu0 0
    %137 = vmatprep.subr.bf16.mxu0 0
    %138 = vmatpush1.bf16.msra.mxu0 0
    %139 = vmatprep.subr.bf16.mxu0 0
    %140 = vmatpush1.bf16.msra.mxu0 0
    %141 = vmatprep.subr.bf16.mxu0 0
    %142 = vmatpush1.bf16.msra.mxu0 0
    %143 = vmatprep.mubr.bf16.mxu0 0
    %144 = vmatmul.mubr.bf16.gmra.mrb[0].mxu0 %v96
    %v145 = vpop.f32.mrb[0].mxu0
    %v146 = vadd.f32 0.0, %v145
    %v147 = vpop.f32.mrb[0].mxu0
    %v148 = vadd.f32 0.0, %v147
    %v149 = vpop.f32.mrb[0].mxu0
    %v150 = vpop.f32.mrb[0].mxu0
    %151 = vdwg.mxu0
    %152 = vmatprep.subr.bf16.mxu0 %v77
    %153 = vmatpush1.bf16.msra.mxu0 %v76
    %154 = vmatprep.subr.bf16.mxu0 %v81
    %155 = vmatpush1.bf16.msra.mxu0 %v80
    %156 = vmatprep.subr.bf16.mxu0 %v109
    %157 = vmatpush1.bf16.msra.mxu0 %v106
    %158 = vmatprep.subr.bf16.mxu0 0
    %159 = vmatpush1.bf16.msra.mxu0 0
    %160 = vmatprep.subr.bf16.mxu0 0
    %161 = vmatpush1.bf16.msra.mxu0 0
    %162 = vmatprep.subr.bf16.mxu0 0
    %163 = vmatpush1.bf16.msra.mxu0 0
    %164 = vmatprep.subr.bf16.mxu0 0
    %165 = vmatpush1.bf16.msra.mxu0 0
    %166 = vmatprep.subr.bf16.mxu0 0
    %167 = vmatpush1.bf16.msra.mxu0 0
    %168 = vmatprep.subr.bf16.mxu0 0
    %169 = vmatpush1.bf16.msra.mxu0 0
    %170 = vmatprep.subr.bf16.mxu0 0
    %171 = vmatpush1.bf16.msra.mxu0 0
    %172 = vmatprep.subr.bf16.mxu0 0
    %173 = vmatpush1.bf16.msra.mxu0 0
    %174 = vmatprep.subr.bf16.mxu0 0
    %175 = vmatpush1.bf16.msra.mxu0 0
    %176 = vmatprep.subr.bf16.mxu0 0
    %177 = vmatpush1.bf16.msra.mxu0 0
    %178 = vmatprep.subr.bf16.mxu0 0
    %179 = vmatpush1.bf16.msra.mxu0 0
    %180 = vmatprep.subr.bf16.mxu0 0
    %181 = vmatpush1.bf16.msra.mxu0 0
    %182 = vmatprep.subr.bf16.mxu0 0
    %183 = vmatpush1.bf16.msra.mxu0 0
    %184 = vmatprep.mubr.bf16.mxu0 0
    %185 = vmatmul.mubr.bf16.gmra.mrb[0].mxu0 %v96
    %v186 = vpop.f32.mrb[0].mxu0
    %v187 = vadd.f32 0.0, %v186
    %v188 = vpop.f32.mrb[0].mxu0
    %v189 = vadd.f32 0.0, %v188
    %v190 = vpop.f32.mrb[0].mxu0
    %v191 = vpop.f32.mrb[0].mxu0
    %192 = vdwg.mxu0
    %v193 = vld [vmem:[%s2] sm:$0xf]
    %195 = vset.pattern.permute.xlu0 0
    %196 = vperm.xlu0 %195, %v193
    %v197 = vpop.permute.xlu0 %196
    %v199 = vmul.f32 %v146, %v197
    %v200 = vmul.f32 %v148, %v197
    %v201 = vmul.f32 %v187, %v197
    %v202 = vmul.f32 %v189, %v197
    %v203 = vld [vmem:[%s3] sm:$0xf]
    %205 = vset.pattern.permute.xlu0 0
    %206 = vperm.xlu0 %205, %v203
    %v207 = vpop.permute.xlu0 %206
    %v209 = vadd.f32 %v199, %v207
    %v210 = vadd.f32 %v200, %v207
    %v211 = vadd.f32 %v201, %v207
    %v212 = vadd.f32 %v202, %v207
    %v213 = vmax.f32 %v209, 0.0
    %v214 = vmax.f32 %v210, 0.0
    %v215 = vmax.f32 %v211, 0.0
    %v216 = vmax.f32 %v212, 0.0
    %v221 = vcombine.low %v213, %v214
    %v222 = vcombine.low %v215, %v216
    %225 = vst [vmem:[#allocation5] sm:$0xff] %v221
    %226 = vst [vmem:[#allocation5 + $0x8] sm:$0xff] %v222
    // Predicated region
    $region22: #{tpu_custom_call.1} parent=1 // pred_check
      _
    $region23: #{tpu_custom_call.1} parent=1 // pred_check_branch
      %228 = sbr.rel (0) target = $region25
    $region24: #{tpu_custom_call.1} parent=1 // pred_region
      %s230 = ssub.s32 256, 256
      %231 = vsyncadd [#allocation4], %s230
      %s233 = sshll.u32 [#allocation5], 4
      %s234 = int_to_ptr.vmem [resolvable:$true] %s233
      %236 = dma.vmem_to_hbm [thread:$0]  %s234, 256, %s4, [#allocation4]
    $region25: #{tpu_custom_call.1} parent=1 // pred_fallthru
      _
    // Predicated region
    $region26: #{tpu_custom_call.1} parent=1 // pred_check
      _
    $region27: #{tpu_custom_call.1} parent=1 // pred_check_branch
      %238 = sbr.rel (0) target = $region29
    $region28: #{tpu_custom_call.1} parent=1 // pred_region
      %239 = dma.done [#allocation4], 256
    $region29: #{tpu_custom_call.1} parent=1 // pred_fallthru
      _
    %240 = vsyncpa [#allocation3], 1
    %241 = vsyncpa [#allocation4], 1

</llo_original>
